<compile_context>
chip_gen: v6e
topology: v6e:2x2x1
jax: 0.10.0
libtpu: 0.0.40
codegen_flags: <defaults>
</compile_context>

<pallas_src>
import functools

import jax
import jax.numpy as jnp
from jax.experimental import pallas as pl
from jax.experimental.pallas import tpu as pltpu

_ONES_ROWS = 8  # constant-1 row block carrying the biases through the MXU


def qmix_kernel(st_ref, aq_ref, wcat_ref, w2_ref, exp_ref, out_ref, *,
                n_agents, embed_dim, hyper_embed):
    f32 = jnp.float32
    A, E, H, P = n_agents, embed_dim, hyper_embed, _ONES_ROWS

    # ---- fused first layer: ones block | hyper_w_1 L1 | hyper_w_final L1 |
    #      V L1 | hyper_b_1.  Biases are folded into the matmul via the
    #      constant-1 row appended to the streamed state block. ----------------
    hcat = jnp.dot(wcat_ref[...], st_ref[...],
                   preferred_element_type=f32)            # (P+2H+2E, TB)

    h2in = jnp.maximum(hcat[0:P + 2 * H + E, :], 0.0)     # ReLU slab; ones rows stay 1
    b1 = hcat[P + 2 * H + E:, :]                          # (E, TB), no ReLU

    # ---- fused second layer: block-diagonal hyper second linears + V second
    #      linear as one extra output row; biases live in column 0 of the
    #      ones block, so no broadcast-add is needed. --------------------------
    out2 = jnp.dot(w2_ref[...], h2in, preferred_element_type=f32)   # (A*E+E+1, TB)
    w1 = jnp.abs(out2[0:A * E, :])                        # (A*E, TB)
    w_final = jnp.abs(out2[A * E:A * E + E, :])           # (E, TB)
    v = out2[A * E + E:, :]                               # (1, TB)

    # ---- hidden = ELU(sum_a q_a * w1_a + b1).  The sublane broadcast of each
    #      q_a over its E rows is done on the MXU with a 0/1 expander. ---------
    q_exp = jnp.dot(exp_ref[...], aq_ref[...],
                    preferred_element_type=f32)           # (A*E, TB)
    hidden = b1
    for a in range(A):                                    # tiny static unroll
        hidden = hidden + q_exp[a * E:(a + 1) * E, :] * w1[a * E:(a + 1) * E, :]
    hidden = jnp.where(hidden > 0.0, hidden,
                       jnp.exp(jnp.minimum(hidden, 0.0)) - 1.0)   # ELU, alpha=1

    # ---- y = sum_e hidden * w_final + v, lane-dense ones-row MXU reduction ---
    y = jnp.dot(jnp.ones((1, E), f32), hidden * w_final,
                preferred_element_type=f32) + v           # (1, TB)
    out_ref[...] = y.astype(out_ref.dtype)


def init_qmix_params(key, n_agents, state_dim, embed_dim, hyper_embed):
    """Deterministic synthetic parameters, stored as (in, out) matrices."""
    ks = jax.random.split(key, 14)

    def lin(kw, kb, din, dout):
        w = jax.random.normal(kw, (din, dout), jnp.float32) * (1.0 / jnp.sqrt(din))
        b = jax.random.normal(kb, (1, dout), jnp.float32) * 0.01
        return w, b

    p = {}
    p["w1a"], p["b1a"] = lin(ks[0], ks[1], state_dim, hyper_embed)
    p["w1b"], p["b1b"] = lin(ks[2], ks[3], hyper_embed, embed_dim * n_agents)
    p["wb"], p["bb"] = lin(ks[4], ks[5], state_dim, embed_dim)
    p["wfa"], p["bfa"] = lin(ks[6], ks[7], state_dim, hyper_embed)
    p["wfb"], p["bfb"] = lin(ks[8], ks[9], hyper_embed, embed_dim)
    p["wv1"], p["bv1"] = lin(ks[10], ks[11], state_dim, embed_dim)
    p["wv2"], p["bv2"] = lin(ks[12], ks[13], embed_dim, 1)
    return p


def _round_up(x, m):
    return ((x + m - 1) // m) * m


def _pack_weights(params, *, n_agents, embed_dim, hyper_embed, compute_dtype):
    """Fuse, transpose and bias-fold the hyper-network weights."""
    A, E, H, P = n_agents, embed_dim, hyper_embed, _ONES_ROWS
    f32 = jnp.float32
    S = params["w1a"].shape[0]

    def head(w, b):                      # (S, dout), (1, dout) -> (dout, S+1)
        return jnp.concatenate([w, b], axis=0).T

    # Fused first layer: (P + 2H + 2E, S+1).  Column S is the bias column,
    # matched by the constant-1 row appended to the streamed state block.
    ones_head = jnp.concatenate(
        [jnp.zeros((P, S), f32), jnp.ones((P, 1), f32)], axis=1)
    wcat = jnp.concatenate([
        ones_head,                            # rows 0:P        -> constant 1
        head(params["w1a"], params["b1a"]),   # rows P:P+H      -> hyper_w_1 L1
        head(params["wfa"], params["bfa"]),   # rows P+H:P+2H   -> hyper_w_final L1
        head(params["wv1"], params["bv1"]),   # next E rows     -> V L1
        head(params["wb"], params["bb"]),     # last E rows     -> hyper_b_1
    ], axis=0)

    # Fused second layer: (A*E + E + 1, P + 2H + E), kept f32 so the f32
    # activations feed the MXU without a per-tile recast.  Biases sit in
    # column 0 of the ones block; the V second linear is the last output row.
    w2 = jnp.zeros((A * E + E + 1, P + 2 * H + E), f32)
    w2 = w2.at[0:A * E, 0:1].set(params["b1b"].T)
    w2 = w2.at[0:A * E, P:P + H].set(params["w1b"].T)
    w2 = w2.at[A * E:A * E + E, 0:1].set(params["bfb"].T)
    w2 = w2.at[A * E:A * E + E, P + H:P + 2 * H].set(params["wfb"].T)
    w2 = w2.at[A * E + E:, 0:1].set(params["bv2"].T)
    w2 = w2.at[A * E + E:, P + 2 * H:].set(params["wv2"].T)

    # 0/1 expander replicating each agent's q over its E hyper-weight rows.
    expander = (jnp.arange(A * E)[:, None] // E
                == jnp.arange(A)[None, :]).astype(f32)

    return wcat.astype(compute_dtype), w2, expander


@functools.partial(
    jax.jit,
    static_argnames=("n_agents", "state_dim", "embed_dim", "hyper_embed",
                     "block_b", "compute_dtype"))
def qmix_forward(agent_qs, states, params, *, n_agents, state_dim, embed_dim,
                 hyper_embed, block_b=2048, compute_dtype=jnp.bfloat16):
    """QMIX mixer forward; returns q_total of shape (B, 1, 1) like PyTorch."""
    A, S, E, H = n_agents, state_dim, embed_dim, hyper_embed
    f32 = jnp.float32
    assert block_b % 128 == 0 and block_b >= 128

    # Flatten leading dims exactly like the PyTorch reshape(-1, ...).
    aq = agent_qs.reshape(-1, A).astype(f32)
    st = states.reshape(-1, S).astype(compute_dtype)
    B = aq.shape[0]

    # Batch tiling: one big lane-dense tile for B <= block_b; otherwise an even
    # number of <= block_b tiles (balanced split across v7x's 2 TensorCores).
    if B <= block_b:
        n_steps, tb = 1, _round_up(B, 128)
    else:
        n_steps = 2 * pl.cdiv(B, 2 * block_b)
        tb = _round_up(pl.cdiv(B, n_steps), 128)
    Bp = n_steps * tb

    # Batch-on-lanes layout with a constant-1 bias row appended.  Under jit the
    # cast + reshape + transpose + pad fuse into the single copy feeding the
    # kernel (no separately materialized HBM relayout).
    stT = jnp.pad(st.T, ((0, 1), (0, Bp - B)), constant_values=1.0)   # (S+1, Bp)
    aqT = jnp.pad(aq.T, ((0, 0), (0, Bp - B)))                        # (A, Bp)

    wcat, w2, expander = _pack_weights(
        params, n_agents=A, embed_dim=E, hyper_embed=H,
        compute_dtype=compute_dtype)

    kernel = functools.partial(qmix_kernel, n_agents=A, embed_dim=E,
                               hyper_embed=H)

    def stream_spec(rows):
        return pl.BlockSpec((rows, tb), lambda i: (0, i))

    def resident_spec(arr):
        return pl.BlockSpec(arr.shape, lambda i: (0, 0))

    itemsize = jnp.dtype(compute_dtype).itemsize
    # Rough per-tile VMEM: double-buffered streams/output + f32 intermediates
    # (hcat, out2, q_exp, w1/w_final/hidden/b1) + resident weights.
    inter_rows = wcat.shape[0] + w2.shape[0] + 2 * A * E + 4 * E + 16
    vmem_est = (tb * (4 * _round_up(S + 1, 8) * itemsize + 4 * 8 * 4 + 2 * 8 * 4
                      + 4 * inter_rows)
                + 8 * (wcat.size * itemsize + 4 * (w2.size + expander.size)))
    # >= 32 MiB so v5e's 16 MiB default scoped VMEM never limits large tiles.
    vmem_limit = int(min(48 * 1024 * 1024, max(32 * 1024 * 1024, 2 * vmem_est)))

    flops = 2 * Bp * ((S + 1) * wcat.shape[0] + w2.shape[1] * w2.shape[0]
                      + A * A * E + 2 * A * E + E)
    bytes_accessed = int(Bp * ((S + 1) * itemsize + A * 4 + 4)
                         + wcat.size * itemsize + 4 * (w2.size + expander.size))

    out = pl.pallas_call(
        kernel,
        out_shape=jax.ShapeDtypeStruct((1, Bp), f32),
        grid_spec=pltpu.PrefetchScalarGridSpec(
            num_scalar_prefetch=0,
            grid=(n_steps,),
            in_specs=[stream_spec(S + 1), stream_spec(A),
                      resident_spec(wcat), resident_spec(w2),
                      resident_spec(expander)],
            out_specs=pl.BlockSpec((1, tb), lambda i: (0, i)),
        ),
        compiler_params=pltpu.CompilerParams(
            dimension_semantics=("parallel",),
            vmem_limit_bytes=vmem_limit),
        cost_estimate=pl.CostEstimate(flops=flops, transcendentals=Bp * E,
                                      bytes_accessed=bytes_accessed),
    )(stT, aqT, wcat, w2, expander)

    # bs = agent_qs.size(0) after reshape == B, so q_total is (B, 1, 1).
    return out[0, :B].reshape(B, 1, 1)


def qmix_reference(agent_qs, states, params, *, n_agents, state_dim, embed_dim):
    """Pure-JAX reference mirroring the PyTorch forward, for validation."""
    st = states.reshape(-1, state_dim).astype(jnp.float32)
    aq = agent_qs.reshape(-1, 1, n_agents).astype(jnp.float32)
    B = st.shape[0]

    h = jax.nn.relu(st @ params["w1a"] + params["b1a"])
    w1 = jnp.abs(h @ params["w1b"] + params["b1b"]).reshape(B, n_agents, embed_dim)
    b1 = (st @ params["wb"] + params["bb"]).reshape(B, 1, embed_dim)
    hidden = jax.nn.elu(jnp.einsum("bij,bjk->bik", aq, w1) + b1)

    hf = jax.nn.relu(st @ params["wfa"] + params["bfa"])
    w_final = jnp.abs(hf @ params["wfb"] + params["bfb"]).reshape(B, embed_dim, 1)

    hv = jax.nn.relu(st @ params["wv1"] + params["bv1"])
    v = (hv @ params["wv2"] + params["bv2"]).reshape(B, 1, 1)

    y = jnp.einsum("bij,bjk->bik", hidden, w_final) + v
    return y.reshape(B, 1, 1)


if __name__ == "__main__":
    num_agents, state_dim, embed_dim, hyper_embed = 4, 32, 32, 64
    key = jax.random.PRNGKey(0)
    k_q, k_s, k_p, k_q2, k_s2 = jax.random.split(key, 5)
    params = init_qmix_params(k_p, num_agents, state_dim, embed_dim, hyper_embed)
    kw = dict(n_agents=num_agents, state_dim=state_dim, embed_dim=embed_dim,
              hyper_embed=hyper_embed)

    # Small shapes consistent with the module's forward (flattened batch B = 8):
    # single 128-lane tile.
    batch, seq = 2, 4
    agent_qs = jax.random.normal(k_q, (batch, seq, num_agents), jnp.float32)
    states = jax.random.normal(k_s, (batch, seq, state_dim), jnp.float32)
    ref = qmix_reference(agent_qs, states, params, n_agents=num_agents,
                         state_dim=state_dim, embed_dim=embed_dim)

    q_f32 = jax.block_until_ready(
        qmix_forward(agent_qs, states, params, compute_dtype=jnp.float32, **kw))
    assert q_f32.shape == (batch * seq, 1, 1), q_f32.shape
    assert jnp.allclose(q_f32, ref, atol=2e-3, rtol=2e-3), "f32 mismatch"

    # Default bf16-stream path validated against the reference with a looser,
    # bf16-level tolerance (accumulation stays f32).
    q_bf16 = jax.block_until_ready(qmix_forward(agent_qs, states, params, **kw))
    assert q_bf16.shape == (batch * seq, 1, 1)
    assert jnp.allclose(q_bf16, ref, atol=1e-1, rtol=5e-2), "bf16 mismatch"

    # Larger flattened batch: block_b=256 forces the multi-tile, even-grid path
    # (B = 640 -> 4 tiles of 256 lanes); default config runs it as one tile.
    batch2, seq2 = 8, 80
    agent_qs2 = jax.random.normal(k_q2, (batch2, seq2, num_agents), jnp.float32)
    states2 = jax.random.normal(k_s2, (batch2, seq2, state_dim), jnp.float32)
    ref2 = qmix_reference(agent_qs2, states2, params, n_agents=num_agents,
                          state_dim=state_dim, embed_dim=embed_dim)

    q2_f32 = jax.block_until_ready(
        qmix_forward(agent_qs2, states2, params, block_b=256,
                     compute_dtype=jnp.float32, **kw))
    assert q2_f32.shape == (batch2 * seq2, 1, 1)
    assert jnp.allclose(q2_f32, ref2, atol=2e-3, rtol=2e-3), "f32 mismatch (tiled)"

    q2_bf16 = jax.block_until_ready(qmix_forward(agent_qs2, states2, params, **kw))
    assert q2_bf16.shape == (batch2 * seq2, 1, 1)
    assert jnp.allclose(q2_bf16, ref2, atol=1e-1, rtol=5e-2), "bf16 mismatch (big)"

    print("KERNEL_OK")
</pallas_src>

<mosaic_0001>
module attributes {stable_mosaic.version = 11 : i64} {
  func.func @qmix_kernel(%arg0: i32, %arg1: memref<33x128xf32, #tpu.memory_space<vmem>>, %arg2: memref<4x128xf32, #tpu.memory_space<vmem>>, %arg3: memref<200x33xf32, #tpu.memory_space<vmem>>, %arg4: memref<161x168xf32, #tpu.memory_space<vmem>>, %arg5: memref<128x4xf32, #tpu.memory_space<vmem>>, %arg6: memref<1x128xf32, #tpu.memory_space<vmem>>) attributes {dimension_semantics = [#tpu.dimension_semantics<parallel>], iteration_bounds = array<i64: 1>, scalar_prefetch = 0 : i64, scratch_operands = 0 : i64, tpu.core_type = #tpu.core_type<tc>, window_params = [{transform_indices = @transform_0, window_bounds = array<i64: 33, 128>}, {transform_indices = @transform_1, window_bounds = array<i64: 4, 128>}, {pipeline_mode = #tpu.pipeline_mode<synchronous>, transform_indices = @transform_2, window_bounds = array<i64: 200, 33>}, {pipeline_mode = #tpu.pipeline_mode<synchronous>, transform_indices = @transform_3, window_bounds = array<i64: 161, 168>}, {pipeline_mode = #tpu.pipeline_mode<synchronous>, transform_indices = @transform_4, window_bounds = array<i64: 128, 4>}, {transform_indices = @transform_5, window_bounds = array<i64: 1, 128>}]} {
    %c0 = arith.constant 0 : index
    %c0_0 = arith.constant 0 : index
    %0 = vector.load %arg3[%c0, %c0_0] : memref<200x33xf32, #tpu.memory_space<vmem>>, vector<200x33xf32>
    %c0_1 = arith.constant 0 : index
    %c0_2 = arith.constant 0 : index
    %1 = vector.load %arg1[%c0_1, %c0_2] : memref<33x128xf32, #tpu.memory_space<vmem>>, vector<33x128xf32>
    %cst = arith.constant dense<0.000000e+00> : vector<200x128xf32>
    %2 = tpu.matmul %0, %1, %cst {dimension_numbers = #tpu.dot_dimension_numbers<[1], [0], [0], [1], [0, 0, 1, 1], [], []>} : vector<200x33xf32>, vector<33x128xf32>, vector<200x128xf32> -> vector<200x128xf32>
    %3 = vector.extract_strided_slice %2 {offsets = [0, 0], sizes = [168, 128], strides = [1, 1]} : vector<200x128xf32> to vector<168x128xf32>
    %cst_3 = arith.constant 0.000000e+00 : f32
    %4 = vector.broadcast %cst_3 : f32 to vector<168x128xf32>
    %5 = arith.maximumf %3, %4 : vector<168x128xf32>
    %6 = vector.extract_strided_slice %2 {offsets = [168, 0], sizes = [32, 128], strides = [1, 1]} : vector<200x128xf32> to vector<32x128xf32>
    %c0_4 = arith.constant 0 : index
    %c0_5 = arith.constant 0 : index
    %7 = vector.load %arg4[%c0_4, %c0_5] : memref<161x168xf32, #tpu.memory_space<vmem>>, vector<161x168xf32>
    %cst_6 = arith.constant dense<0.000000e+00> : vector<161x128xf32>
    %8 = tpu.matmul %7, %5, %cst_6 {dimension_numbers = #tpu.dot_dimension_numbers<[1], [0], [0], [1], [0, 0, 1, 1], [], []>} : vector<161x168xf32>, vector<168x128xf32>, vector<161x128xf32> -> vector<161x128xf32>
    %9 = vector.extract_strided_slice %8 {offsets = [0, 0], sizes = [128, 128], strides = [1, 1]} : vector<161x128xf32> to vector<128x128xf32>
    %10 = math.absf %9 : vector<128x128xf32>
    %11 = vector.extract_strided_slice %8 {offsets = [128, 0], sizes = [32, 128], strides = [1, 1]} : vector<161x128xf32> to vector<32x128xf32>
    %12 = math.absf %11 : vector<32x128xf32>
    %13 = vector.extract_strided_slice %8 {offsets = [160, 0], sizes = [1, 128], strides = [1, 1]} : vector<161x128xf32> to vector<1x128xf32>
    %c0_7 = arith.constant 0 : index
    %c0_8 = arith.constant 0 : index
    %14 = vector.load %arg5[%c0_7, %c0_8] : memref<128x4xf32, #tpu.memory_space<vmem>>, vector<128x4xf32>
    %c0_9 = arith.constant 0 : index
    %c0_10 = arith.constant 0 : index
    %15 = vector.load %arg2[%c0_9, %c0_10] : memref<4x128xf32, #tpu.memory_space<vmem>>, vector<4x128xf32>
    %cst_11 = arith.constant dense<0.000000e+00> : vector<128x128xf32>
    %16 = tpu.matmul %14, %15, %cst_11 {dimension_numbers = #tpu.dot_dimension_numbers<[1], [0], [0], [1], [0, 0, 1, 1], [], []>} : vector<128x4xf32>, vector<4x128xf32>, vector<128x128xf32> -> vector<128x128xf32>
    %17 = vector.extract_strided_slice %16 {offsets = [0, 0], sizes = [32, 128], strides = [1, 1]} : vector<128x128xf32> to vector<32x128xf32>
    %18 = vector.extract_strided_slice %10 {offsets = [0, 0], sizes = [32, 128], strides = [1, 1]} : vector<128x128xf32> to vector<32x128xf32>
    %19 = arith.mulf %17, %18 : vector<32x128xf32>
    %20 = arith.addf %6, %19 : vector<32x128xf32>
    %21 = vector.extract_strided_slice %16 {offsets = [32, 0], sizes = [32, 128], strides = [1, 1]} : vector<128x128xf32> to vector<32x128xf32>
    %22 = vector.extract_strided_slice %10 {offsets = [32, 0], sizes = [32, 128], strides = [1, 1]} : vector<128x128xf32> to vector<32x128xf32>
    %23 = arith.mulf %21, %22 : vector<32x128xf32>
    %24 = arith.addf %20, %23 : vector<32x128xf32>
    %25 = vector.extract_strided_slice %16 {offsets = [64, 0], sizes = [32, 128], strides = [1, 1]} : vector<128x128xf32> to vector<32x128xf32>
    %26 = vector.extract_strided_slice %10 {offsets = [64, 0], sizes = [32, 128], strides = [1, 1]} : vector<128x128xf32> to vector<32x128xf32>
    %27 = arith.mulf %25, %26 : vector<32x128xf32>
    %28 = arith.addf %24, %27 : vector<32x128xf32>
    %29 = vector.extract_strided_slice %16 {offsets = [96, 0], sizes = [32, 128], strides = [1, 1]} : vector<128x128xf32> to vector<32x128xf32>
    %30 = vector.extract_strided_slice %10 {offsets = [96, 0], sizes = [32, 128], strides = [1, 1]} : vector<128x128xf32> to vector<32x128xf32>
    %31 = arith.mulf %29, %30 : vector<32x128xf32>
    %32 = arith.addf %28, %31 : vector<32x128xf32>
    %cst_12 = arith.constant 0.000000e+00 : f32
    %33 = vector.broadcast %cst_12 : f32 to vector<32x128xf32>
    %34 = arith.cmpf ogt, %32, %33 : vector<32x128xf32>
    %cst_13 = arith.constant 0.000000e+00 : f32
    %35 = vector.broadcast %cst_13 : f32 to vector<32x128xf32>
    %36 = arith.minimumf %32, %35 : vector<32x128xf32>
    %37 = math.exp %36 : vector<32x128xf32>
    %cst_14 = arith.constant 1.000000e+00 : f32
    %38 = vector.broadcast %cst_14 : f32 to vector<32x128xf32>
    %39 = arith.subf %37, %38 : vector<32x128xf32>
    %40 = arith.select %34, %32, %39 : vector<32x128xi1>, vector<32x128xf32>
    %cst_15 = arith.constant 1.000000e+00 : f32
    %41 = vector.broadcast %cst_15 : f32 to vector<1x32xf32>
    %42 = arith.mulf %40, %12 : vector<32x128xf32>
    %cst_16 = arith.constant dense<0.000000e+00> : vector<1x128xf32>
    %43 = tpu.matmul %41, %42, %cst_16 {dimension_numbers = #tpu.dot_dimension_numbers<[1], [0], [0], [1], [0, 0, 1, 1], [], []>} : vector<1x32xf32>, vector<32x128xf32>, vector<1x128xf32> -> vector<1x128xf32>
    %44 = arith.addf %43, %13 : vector<1x128xf32>
    %c0_17 = arith.constant 0 : index
    %c0_18 = arith.constant 0 : index
    %45 = vector.load %arg6[%c0_17, %c0_18] : memref<1x128xf32, #tpu.memory_space<vmem>>, vector<1x128xf32>
    tpu.vector_store %arg6[%c0_17, %c0_18], %44 {strides = array<i32>} : memref<1x128xf32, #tpu.memory_space<vmem>>, vector<1x128xf32>,
    return
  }
  func.func @transform_0(%arg0: i32) -> (i32, i32) {
    %c0_i32 = arith.constant 0 : i32
    %c0_i32_0 = arith.constant 0 : i32
    return %c0_i32, %arg0 : i32, i32
  }
  func.func @transform_1(%arg0: i32) -> (i32, i32) {
    %c0_i32 = arith.constant 0 : i32
    %c0_i32_0 = arith.constant 0 : i32
    return %c0_i32, %arg0 : i32, i32
  }
  func.func @transform_2(%arg0: i32) -> (i32, i32) {
    %c0_i32 = arith.constant 0 : i32
    %c0_i32_0 = arith.constant 0 : i32
    %c0_i32_1 = arith.constant 0 : i32
    return %c0_i32, %c0_i32_0 : i32, i32
  }
  func.func @transform_3(%arg0: i32) -> (i32, i32) {
    %c0_i32 = arith.constant 0 : i32
    %c0_i32_0 = arith.constant 0 : i32
    %c0_i32_1 = arith.constant 0 : i32
    return %c0_i32, %c0_i32_0 : i32, i32
  }
  func.func @transform_4(%arg0: i32) -> (i32, i32) {
    %c0_i32 = arith.constant 0 : i32
    %c0_i32_0 = arith.constant 0 : i32
    %c0_i32_1 = arith.constant 0 : i32
    return %c0_i32, %c0_i32_0 : i32, i32
  }
  func.func @transform_5(%arg0: i32) -> (i32, i32) {
    %c0_i32 = arith.constant 0 : i32
    %c0_i32_0 = arith.constant 0 : i32
    return %c0_i32, %arg0 : i32, i32
  }
}

</mosaic_0001>

<llo_original>
// kernel: qmix_forward.1
$region0: #{qmix_forward.1}
  #allocation0 [shape = 'u32[]', space=smem, size = 0x4, offset = 0x4, fixed_abs, tag = 'smem constant byte address 0x4 - core index']
  #allocation1 [shape = 'u32[144,128]{1,0:T(1,128)}', space=vmem, size = 0x12000, scoped, tag = 'internal scratch']
  %s0 = inlined_call_operand.vmem [shape: f32[33,128], index: 0, kind: input, shape index: {}]
  %s1 = inlined_call_operand.vmem [shape: f32[4,128], index: 1, kind: input, shape index: {}]
  %s2 = inlined_call_operand.vmem [shape: f32[200,33], index: 2, kind: input, shape index: {}]
  %s3 = inlined_call_operand.vmem [shape: f32[161,168], index: 3, kind: input, shape index: {}]
  %s4 = inlined_call_operand.vmem [shape: f32[128,4], index: 4, kind: input, shape index: {}]
  %s5 = inlined_call_operand.vmem [shape: f32[1,128], index: 5, kind: output, shape index: {}]
  %s6 = sld [smem:[#allocation0]]
  $region30: #{qmix_forward.1} parent=0
    _
  %s8 = ssub.s32 1, %s6
  %s9 = scalar_select 0, %s8, %s6
  // Predicated region
  $region2: #{qmix_forward.1} parent=0 // pred_check
    _
  $region3: #{qmix_forward.1} parent=0 // pred_check_branch
    %11 = sbr.rel (0) target = $region5
  $region4: #{qmix_forward.1} parent=0 // pred_region
    _
  $region5: #{qmix_forward.1} parent=0 // pred_fallthru
    _
  // Predicated region
  $region6: #{qmix_forward.1} parent=0 // pred_check
    _
  $region7: #{qmix_forward.1} parent=0 // pred_check_branch
    %13 = sbr.rel (0) target = $region9
  $region8: #{qmix_forward.1} parent=0 // pred_region
    _
  $region9: #{qmix_forward.1} parent=0 // pred_fallthru
    _
  // Predicated region
  $region10: #{qmix_forward.1} parent=0 // pred_check
    _
  $region11: #{qmix_forward.1} parent=0 // pred_check_branch
    %15 = sbr.rel (0) target = $region13
  $region12: #{qmix_forward.1} parent=0 // pred_region
    _
  $region13: #{qmix_forward.1} parent=0 // pred_fallthru
    _
  // Predicated region
  $region14: #{qmix_forward.1} parent=0 // pred_check
    _
  $region15: #{qmix_forward.1} parent=0 // pred_check_branch
    %17 = sbr.rel (0) target = $region17
  $region16: #{qmix_forward.1} parent=0 // pred_region
    _
  $region17: #{qmix_forward.1} parent=0 // pred_fallthru
    _
  // Predicated region
  $region18: #{qmix_forward.1} parent=0 // pred_check
    _
  $region19: #{qmix_forward.1} parent=0 // pred_check_branch
    %19 = sbr.rel (0) target = $region21
  $region20: #{qmix_forward.1} parent=0 // pred_region
    _
  $region21: #{qmix_forward.1} parent=0 // pred_fallthru
    _
  %v20 = vld [vmem:[%s2] sm:$0xff]
  %v21 = vld [vmem:[%s2 + $0x8] sm:$0xff]
  %v22 = vld [vmem:[%s2 + $0x10] sm:$0xff]
  %v23 = vld [vmem:[%s2 + $0x18] sm:$0xff]
  %v24 = vld [vmem:[%s2 + $0x20] sm:$0xff]
  %v25 = vld [vmem:[%s2 + $0x28] sm:$0xff]
  %v26 = vld [vmem:[%s2 + $0x30] sm:$0xff]
  %v27 = vld [vmem:[%s2 + $0x38] sm:$0xff]
  %v28 = vld [vmem:[%s2 + $0x40] sm:$0xff]
  %v29 = vld [vmem:[%s2 + $0x48] sm:$0xff]
  %v30 = vld [vmem:[%s2 + $0x50] sm:$0xff]
  %v31 = vld [vmem:[%s2 + $0x58] sm:$0xff]
  %v32 = vld [vmem:[%s2 + $0x60] sm:$0xff]
  %v33 = vld [vmem:[%s2 + $0x68] sm:$0xff]
  %v34 = vld [vmem:[%s2 + $0x70] sm:$0xff]
  %v35 = vld [vmem:[%s2 + $0x78] sm:$0xff]
  %v36 = vld [vmem:[%s2 + $0x80] sm:$0xff]
  %v37 = vld [vmem:[%s2 + $0x88] sm:$0xff]
  %v38 = vld [vmem:[%s2 + $0x90] sm:$0xff]
  %v39 = vld [vmem:[%s2 + $0x98] sm:$0xff]
  %v40 = vld [vmem:[%s2 + $0xa0] sm:$0xff]
  %v41 = vld [vmem:[%s2 + $0xa8] sm:$0xff]
  %v42 = vld [vmem:[%s2 + $0xb0] sm:$0xff]
  %v43 = vld [vmem:[%s2 + $0xb8] sm:$0xff]
  %v44 = vld [vmem:[%s2 + $0xc0] sm:$0xff]
  %v45 = vld [vmem:[%s0] sm:$0xff]
  %v46 = vld [vmem:[%s0 + $0x8] sm:$0xff]
  %v47 = vld [vmem:[%s0 + $0x10] sm:$0xff]
  %v48 = vld [vmem:[%s0 + $0x18] sm:$0xff]
  %v49 = vld [vmem:[%s0 + $0x20] sm:$0x1]
  %vm50 = vcmask 269312
  %v52 = vsel %vm50, %v20, 0
  %v55 = vsel %vm50, %v21, 0
  %v58 = vsel %vm50, %v22, 0
  %v61 = vsel %vm50, %v23, 0
  %v64 = vsel %vm50, %v24, 0
  %v67 = vsel %vm50, %v25, 0
  %v70 = vsel %vm50, %v26, 0
  %v73 = vsel %vm50, %v27, 0
  %v76 = vsel %vm50, %v28, 0
  %v79 = vsel %vm50, %v29, 0
  %v82 = vsel %vm50, %v30, 0
  %v85 = vsel %vm50, %v31, 0
  %v88 = vsel %vm50, %v32, 0
  %v91 = vsel %vm50, %v33, 0
  %v94 = vsel %vm50, %v34, 0
  %v97 = vsel %vm50, %v35, 0
  %v100 = vsel %vm50, %v36, 0
  %v103 = vsel %vm50, %v37, 0
  %v106 = vsel %vm50, %v38, 0
  %v109 = vsel %vm50, %v39, 0
  %v112 = vsel %vm50, %v40, 0
  %v115 = vsel %vm50, %v41, 0
  %v118 = vsel %vm50, %v42, 0
  %v121 = vsel %vm50, %v43, 0
  %v124 = vsel %vm50, %v44, 0
  %vm126 = vcmask 1040384
  %v128 = vsel %vm126, %v49, 0
  %130 = vmatprep.subr.mxu0 0.0
  %131 = vmatpush1.msra.mxu0 0.0
  %132 = vmatprep.subr.mxu0 0.0
  %133 = vmatpush1.msra.mxu0 0.0
  %134 = vmatprep.subr.mxu0 0.0
  %135 = vmatpush1.msra.mxu0 0.0
  %136 = vmatprep.subr.mxu0 0.0
  %137 = vmatpush1.msra.mxu0 0.0
  %138 = vmatprep.subr.mxu0 0.0
  %139 = vmatpush1.msra.mxu0 0.0
  %140 = vmatprep.subr.mxu0 0.0
  %141 = vmatpush1.msra.mxu0 0.0
  %142 = vmatprep.subr.mxu0 0.0
  %143 = vmatpush1.msra.mxu0 0.0
  %144 = vmatprep.subr.mxu0 0.0
  %145 = vmatpush1.msra.mxu0 0.0
  %146 = vmatprep.subr.mxu0 0.0
  %147 = vmatpush1.msra.mxu0 0.0
  %148 = vmatprep.subr.mxu0 0.0
  %149 = vmatpush1.msra.mxu0 0.0
  %150 = vmatprep.subr.mxu0 0.0
  %151 = vmatpush1.msra.mxu0 0.0
  %152 = vmatprep.subr.mxu0 0.0
  %153 = vmatpush1.msra.mxu0 %v128
  %154 = vmatprep.subr.mxu0 0.0
  %155 = vmatpush1.msra.mxu0 %v48
  %156 = vmatprep.subr.mxu0 0.0
  %157 = vmatpush1.msra.mxu0 %v47
  %158 = vmatprep.subr.mxu0 0.0
  %159 = vmatpush1.msra.mxu0 %v46
  %160 = vmatprep.subr.mxu0 0.0
  %161 = vmatpush1.msra.mxu0 %v45
  %162 = vmatprep.subr.mxu0 0.0
  %163 = vmatpush2.msra.mxu0 0.0
  %164 = vmatprep.subr.mxu0 0.0
  %165 = vmatpush2.msra.mxu0 0.0
  %166 = vmatprep.subr.mxu0 0.0
  %167 = vmatpush2.msra.mxu0 0.0
  %168 = vmatprep.subr.mxu0 0.0
  %169 = vmatpush2.msra.mxu0 0.0
  %170 = vmatprep.subr.mxu0 0.0
  %171 = vmatpush2.msra.mxu0 0.0
  %172 = vmatprep.subr.mxu0 0.0
  %173 = vmatpush2.msra.mxu0 0.0
  %174 = vmatprep.subr.mxu0 0.0
  %175 = vmatpush2.msra.mxu0 0.0
  %176 = vmatprep.subr.mxu0 0.0
  %177 = vmatpush2.msra.mxu0 0.0
  %178 = vmatprep.subr.mxu0 0.0
  %179 = vmatpush2.msra.mxu0 0.0
  %180 = vmatprep.subr.mxu0 0.0
  %181 = vmatpush2.msra.mxu0 0.0
  %182 = vmatprep.subr.mxu0 0.0
  %183 = vmatpush2.msra.mxu0 0.0
  %184 = vmatprep.subr.mxu0 0.0
  %185 = vmatpush2.msra.mxu0 0.0
  %186 = vmatprep.subr.mxu0 0.0
  %187 = vmatpush2.msra.mxu0 0.0
  %188 = vmatprep.subr.mxu0 0.0
  %189 = vmatpush2.msra.mxu0 0.0
  %190 = vmatprep.subr.mxu0 0.0
  %191 = vmatpush2.msra.mxu0 0.0
  %192 = vmatprep.subr.mxu0 0.0
  %193 = vmatpush2.msra.mxu0 0.0
  %194 = vmatprep.mubr.f32.mxu0 0.0
  %195 = vmatmul.mubr.f32.gmra.mxu0 %v52
  %v196 = vpop.f32.mrf.mxu0
  %v197 = vadd.f32 0.0, %v196
  %v198 = vpop.f32.mrf.mxu0
  %199 = vmatprep.mubr.f32.mxu0 0.0
  %200 = vmatmul.mubr.f32.gmra.mxu0 %v55
  %v201 = vpop.f32.mrf.mxu0
  %v202 = vadd.f32 0.0, %v201
  %v203 = vpop.f32.mrf.mxu0
  %204 = vmatprep.mubr.f32.mxu0 0.0
  %205 = vmatmul.mubr.f32.gmra.mxu0 %v58
  %v206 = vpop.f32.mrf.mxu0
  %v207 = vadd.f32 0.0, %v206
  %v208 = vpop.f32.mrf.mxu0
  %209 = vmatprep.mubr.f32.mxu0 0.0
  %210 = vmatmul.mubr.f32.gmra.mxu0 %v61
  %v211 = vpop.f32.mrf.mxu0
  %v212 = vadd.f32 0.0, %v211
  %v213 = vpop.f32.mrf.mxu0
  %214 = vmatprep.mubr.f32.mxu0 0.0
  %215 = vmatmul.mubr.f32.gmra.mxu0 %v64
  %v216 = vpop.f32.mrf.mxu0
  %v217 = vadd.f32 0.0, %v216
  %v218 = vpop.f32.mrf.mxu0
  %219 = vmatprep.mubr.f32.mxu0 0.0
  %220 = vmatmul.mubr.f32.gmra.mxu0 %v67
  %v221 = vpop.f32.mrf.mxu0
  %v222 = vadd.f32 0.0, %v221
  %v223 = vpop.f32.mrf.mxu0
  %224 = vmatprep.mubr.f32.mxu0 0.0
  %225 = vmatmul.mubr.f32.gmra.mxu0 %v70
  %v226 = vpop.f32.mrf.mxu0
  %v227 = vadd.f32 0.0, %v226
  %v228 = vpop.f32.mrf.mxu0
  %229 = vmatprep.mubr.f32.mxu0 0.0
  %230 = vmatmul.mubr.f32.gmra.mxu0 %v73
  %v231 = vpop.f32.mrf.mxu0
  %v232 = vadd.f32 0.0, %v231
  %v233 = vpop.f32.mrf.mxu0
  %234 = vmatprep.mubr.f32.mxu0 0.0
  %235 = vmatmul.mubr.f32.gmra.mxu0 %v76
  %v236 = vpop.f32.mrf.mxu0
  %v237 = vadd.f32 0.0, %v236
  %v238 = vpop.f32.mrf.mxu0
  %239 = vmatprep.mubr.f32.mxu0 0.0
  %240 = vmatmul.mubr.f32.gmra.mxu0 %v79
  %v241 = vpop.f32.mrf.mxu0
  %v242 = vadd.f32 0.0, %v241
  %v243 = vpop.f32.mrf.mxu0
  %244 = vmatprep.mubr.f32.mxu0 0.0
  %245 = vmatmul.mubr.f32.gmra.mxu0 %v82
  %v246 = vpop.f32.mrf.mxu0
  %v247 = vadd.f32 0.0, %v246
  %v248 = vpop.f32.mrf.mxu0
  %249 = vmatprep.mubr.f32.mxu0 0.0
  %250 = vmatmul.mubr.f32.gmra.mxu0 %v85
  %v251 = vpop.f32.mrf.mxu0
  %v252 = vadd.f32 0.0, %v251
  %v253 = vpop.f32.mrf.mxu0
  %254 = vmatprep.mubr.f32.mxu0 0.0
  %255 = vmatmul.mubr.f32.gmra.mxu0 %v88
  %v256 = vpop.f32.mrf.mxu0
  %v257 = vadd.f32 0.0, %v256
  %v258 = vpop.f32.mrf.mxu0
  %259 = vmatprep.mubr.f32.mxu0 0.0
  %260 = vmatmul.mubr.f32.gmra.mxu0 %v91
  %v261 = vpop.f32.mrf.mxu0
  %v262 = vadd.f32 0.0, %v261
  %v263 = vpop.f32.mrf.mxu0
  %264 = vmatprep.mubr.f32.mxu0 0.0
  %265 = vmatmul.mubr.f32.gmra.mxu0 %v94
  %v266 = vpop.f32.mrf.mxu0
  %v267 = vadd.f32 0.0, %v266
  %v268 = vpop.f32.mrf.mxu0
  %269 = vmatprep.mubr.f32.mxu0 0.0
  %270 = vmatmul.mubr.f32.gmra.mxu0 %v97
  %v271 = vpop.f32.mrf.mxu0
  %v272 = vadd.f32 0.0, %v271
  %v273 = vpop.f32.mrf.mxu0
  %274 = vmatprep.mubr.f32.mxu0 0.0
  %275 = vmatmul.mubr.f32.gmra.mxu0 %v100
  %v276 = vpop.f32.mrf.mxu0
  %v277 = vadd.f32 0.0, %v276
  %v278 = vpop.f32.mrf.mxu0
  %279 = vmatprep.mubr.f32.mxu0 0.0
  %280 = vmatmul.mubr.f32.gmra.mxu0 %v103
  %v281 = vpop.f32.mrf.mxu0
  %v282 = vadd.f32 0.0, %v281
  %v283 = vpop.f32.mrf.mxu0
  %284 = vmatprep.mubr.f32.mxu0 0.0
  %285 = vmatmul.mubr.f32.gmra.mxu0 %v106
  %v286 = vpop.f32.mrf.mxu0
  %v287 = vadd.f32 0.0, %v286
  %v288 = vpop.f32.mrf.mxu0
  %289 = vmatprep.mubr.f32.mxu0 0.0
  %290 = vmatmul.mubr.f32.gmra.mxu0 %v109
  %v291 = vpop.f32.mrf.mxu0
  %v292 = vadd.f32 0.0, %v291
  %v293 = vpop.f32.mrf.mxu0
  %294 = vmatprep.mubr.f32.mxu0 0.0
  %295 = vmatmul.mubr.f32.gmra.mxu0 %v112
  %v296 = vpop.f32.mrf.mxu0
  %v297 = vadd.f32 0.0, %v296
  %v298 = vpop.f32.mrf.mxu0
  %299 = vmatprep.mubr.f32.mxu0 0.0
  %300 = vmatmul.mubr.f32.gmra.mxu0 %v115
  %v301 = vpop.f32.mrf.mxu0
  %v302 = vadd.f32 0.0, %v301
  %v303 = vpop.f32.mrf.mxu0
  %304 = vmatprep.mubr.f32.mxu0 0.0
  %305 = vmatmul.mubr.f32.gmra.mxu0 %v118
  %v306 = vpop.f32.mrf.mxu0
  %v307 = vadd.f32 0.0, %v306
  %v308 = vpop.f32.mrf.mxu0
  %309 = vmatprep.mubr.f32.mxu0 0.0
  %310 = vmatmul.mubr.f32.gmra.mxu0 %v121
  %v311 = vpop.f32.mrf.mxu0
  %v312 = vadd.f32 0.0, %v311
  %v313 = vpop.f32.mrf.mxu0
  %314 = vmatprep.mubr.f32.mxu0 0.0
  %315 = vmatmul.mubr.f32.gmra.mxu0 %v124
  %v316 = vpop.f32.mrf.mxu0
  %v317 = vadd.f32 0.0, %v316
  %v318 = vpop.f32.mrf.mxu0
  %319 = vdwg.mxu0
  %v320 = vmax.f32 %v197, 0.0
  %v321 = vmax.f32 %v202, 0.0
  %v322 = vmax.f32 %v207, 0.0
  %v323 = vmax.f32 %v212, 0.0
  %v324 = vmax.f32 %v217, 0.0
  %v325 = vmax.f32 %v222, 0.0
  %v326 = vmax.f32 %v227, 0.0
  %v327 = vmax.f32 %v232, 0.0
  %v328 = vmax.f32 %v237, 0.0
  %v329 = vmax.f32 %v242, 0.0
  %v330 = vmax.f32 %v247, 0.0
  %v331 = vmax.f32 %v252, 0.0
  %v332 = vmax.f32 %v257, 0.0
  %v333 = vmax.f32 %v262, 0.0
  %v334 = vmax.f32 %v267, 0.0
  %v335 = vmax.f32 %v272, 0.0
  %v336 = vmax.f32 %v277, 0.0
  %v337 = vmax.f32 %v282, 0.0
  %v338 = vmax.f32 %v287, 0.0
  %v339 = vmax.f32 %v292, 0.0
  %v340 = vmax.f32 %v297, 0.0
  %v341 = vld [vmem:[%s3] sm:$0xff]
  %v342 = vld [vmem:[%s3 + $0x8] sm:$0xff]
  %v343 = vld [vmem:[%s3 + $0x10] sm:$0xff]
  %v344 = vld [vmem:[%s3 + $0x18] sm:$0xff]
  %v345 = vld [vmem:[%s3 + $0x20] sm:$0xff]
  %v346 = vld [vmem:[%s3 + $0x28] sm:$0xff]
  %v347 = vld [vmem:[%s3 + $0x30] sm:$0xff]
  %v348 = vld [vmem:[%s3 + $0x38] sm:$0xff]
  %v349 = vld [vmem:[%s3 + $0x40] sm:$0xff]
  %v350 = vld [vmem:[%s3 + $0x48] sm:$0xff]
  %v351 = vld [vmem:[%s3 + $0x50] sm:$0xff]
  %v352 = vld [vmem:[%s3 + $0x58] sm:$0xff]
  %v353 = vld [vmem:[%s3 + $0x60] sm:$0xff]
  %v354 = vld [vmem:[%s3 + $0x68] sm:$0xff]
  %v355 = vld [vmem:[%s3 + $0x70] sm:$0xff]
  %v356 = vld [vmem:[%s3 + $0x78] sm:$0xff]
  %v357 = vld [vmem:[%s3 + $0x80] sm:$0xff]
  %v358 = vld [vmem:[%s3 + $0x88] sm:$0xff]
  %v359 = vld [vmem:[%s3 + $0x90] sm:$0xff]
  %v360 = vld [vmem:[%s3 + $0x98] sm:$0xff]
  %v361 = vld [vmem:[%s3 + $0xa0] sm:$0xff]
  %v362 = vld [vmem:[%s3 + $0xa8] sm:$0xff]
  %v363 = vld [vmem:[%s3 + $0xb0] sm:$0xff]
  %v364 = vld [vmem:[%s3 + $0xb8] sm:$0xff]
  %v365 = vld [vmem:[%s3 + $0xc0] sm:$0xff]
  %v366 = vld [vmem:[%s3 + $0xc8] sm:$0xff]
  %v367 = vld [vmem:[%s3 + $0xd0] sm:$0xff]
  %v368 = vld [vmem:[%s3 + $0xd8] sm:$0xff]
  %v369 = vld [vmem:[%s3 + $0xe0] sm:$0xff]
  %v370 = vld [vmem:[%s3 + $0xe8] sm:$0xff]
  %v371 = vld [vmem:[%s3 + $0xf0] sm:$0xff]
  %v372 = vld [vmem:[%s3 + $0xf8] sm:$0xff]
  %v373 = vld [vmem:[%s3 + $0x100] sm:$0xff]
  %v374 = vld [vmem:[%s3 + $0x108] sm:$0xff]
  %v375 = vld [vmem:[%s3 + $0x110] sm:$0xff]
  %v376 = vld [vmem:[%s3 + $0x118] sm:$0xff]
  %v377 = vld [vmem:[%s3 + $0x120] sm:$0xff]
  %v378 = vld [vmem:[%s3 + $0x128] sm:$0xff]
  %v379 = vld [vmem:[%s3 + $0x130] sm:$0xff]
  %v380 = vld [vmem:[%s3 + $0x138] sm:$0xff]
  %v381 = vld [vmem:[%s3 + $0x140] sm:$0x1]
  %v382 = vld [vmem:[%s3 + $0x148] sm:$0x1]
  %vm383 = vcmask 326656
  %v385 = vsel %vm383, %v342, 0
  %v388 = vsel %vm383, %v344, 0
  %v391 = vsel %vm383, %v346, 0
  %v394 = vsel %vm383, %v348, 0
  %v397 = vsel %vm383, %v350, 0
  %v400 = vsel %vm383, %v352, 0
  %v403 = vsel %vm383, %v354, 0
  %v406 = vsel %vm383, %v356, 0
  %v409 = vsel %vm383, %v358, 0
  %v412 = vsel %vm383, %v360, 0
  %v415 = vsel %vm383, %v362, 0
  %v418 = vsel %vm383, %v364, 0
  %v421 = vsel %vm383, %v366, 0
  %v424 = vsel %vm383, %v368, 0
  %v427 = vsel %vm383, %v370, 0
  %v430 = vsel %vm383, %v372, 0
  %v433 = vsel %vm383, %v374, 0
  %v436 = vsel %vm383, %v376, 0
  %v439 = vsel %vm383, %v378, 0
  %v442 = vsel %vm383, %v380, 0
  %v445 = vsel %vm383, %v382, 0
  %447 = vmatprep.subr.mxu0 0.0
  %448 = vmatpush1.msra.mxu0 %v335
  %449 = vmatprep.subr.mxu0 0.0
  %450 = vmatpush1.msra.mxu0 %v334
  %451 = vmatprep.subr.mxu0 0.0
  %452 = vmatpush1.msra.mxu0 %v333
  %453 = vmatprep.subr.mxu0 0.0
  %454 = vmatpush1.msra.mxu0 %v332
  %455 = vmatprep.subr.mxu0 0.0
  %456 = vmatpush1.msra.mxu0 %v331
  %457 = vmatprep.subr.mxu0 0.0
  %458 = vmatpush1.msra.mxu0 %v330
  %459 = vmatprep.subr.mxu0 0.0
  %460 = vmatpush1.msra.mxu0 %v329
  %461 = vmatprep.subr.mxu0 0.0
  %462 = vmatpush1.msra.mxu0 %v328
  %463 = vmatprep.subr.mxu0 0.0
  %464 = vmatpush1.msra.mxu0 %v327
  %465 = vmatprep.subr.mxu0 0.0
  %466 = vmatpush1.msra.mxu0 %v326
  %467 = vmatprep.subr.mxu0 0.0
  %468 = vmatpush1.msra.mxu0 %v325
  %469 = vmatprep.subr.mxu0 0.0
  %470 = vmatpush1.msra.mxu0 %v324
  %471 = vmatprep.subr.mxu0 0.0
  %472 = vmatpush1.msra.mxu0 %v323
  %473 = vmatprep.subr.mxu0 0.0
  %474 = vmatpush1.msra.mxu0 %v322
  %475 = vmatprep.subr.mxu0 0.0
  %476 = vmatpush1.msra.mxu0 %v321
  %477 = vmatprep.subr.mxu0 0.0
  %478 = vmatpush1.msra.mxu0 %v320
  %479 = vmatprep.subr.mxu0 0.0
  %480 = vmatpush2.msra.mxu0 0.0
  %481 = vmatprep.subr.mxu0 0.0
  %482 = vmatpush2.msra.mxu0 0.0
  %483 = vmatprep.subr.mxu0 0.0
  %484 = vmatpush2.msra.mxu0 0.0
  %485 = vmatprep.subr.mxu0 0.0
  %486 = vmatpush2.msra.mxu0 0.0
  %487 = vmatprep.subr.mxu0 0.0
  %488 = vmatpush2.msra.mxu0 0.0
  %489 = vmatprep.subr.mxu0 0.0
  %490 = vmatpush2.msra.mxu0 0.0
  %491 = vmatprep.subr.mxu0 0.0
  %492 = vmatpush2.msra.mxu0 0.0
  %493 = vmatprep.subr.mxu0 0.0
  %494 = vmatpush2.msra.mxu0 0.0
  %495 = vmatprep.subr.mxu0 0.0
  %496 = vmatpush2.msra.mxu0 0.0
  %497 = vmatprep.subr.mxu0 0.0
  %498 = vmatpush2.msra.mxu0 0.0
  %499 = vmatprep.subr.mxu0 0.0
  %500 = vmatpush2.msra.mxu0 0.0
  %501 = vmatprep.subr.mxu0 0.0
  %502 = vmatpush2.msra.mxu0 %v340
  %503 = vmatprep.subr.mxu0 0.0
  %504 = vmatpush2.msra.mxu0 %v339
  %505 = vmatprep.subr.mxu0 0.0
  %506 = vmatpush2.msra.mxu0 %v338
  %507 = vmatprep.subr.mxu0 0.0
  %508 = vmatpush2.msra.mxu0 %v337
  %509 = vmatprep.subr.mxu0 0.0
  %510 = vmatpush2.msra.mxu0 %v336
  %511 = vmatprep.mubr.f32.mxu0 %v385
  %512 = vmatmul.mubr.f32.gmra.mxu0 %v341
  %v513 = vpop.f32.mrf.mxu0
  %v514 = vadd.f32 0.0, %v513
  %v515 = vpop.f32.mrf.mxu0
  %516 = vmatprep.mubr.f32.mxu0 %v388
  %517 = vmatmul.mubr.f32.gmra.mxu0 %v343
  %v518 = vpop.f32.mrf.mxu0
  %v519 = vadd.f32 0.0, %v518
  %v520 = vpop.f32.mrf.mxu0
  %521 = vmatprep.mubr.f32.mxu0 %v391
  %522 = vmatmul.mubr.f32.gmra.mxu0 %v345
  %v523 = vpop.f32.mrf.mxu0
  %v524 = vadd.f32 0.0, %v523
  %v525 = vpop.f32.mrf.mxu0
  %526 = vmatprep.mubr.f32.mxu0 %v394
  %527 = vmatmul.mubr.f32.gmra.mxu0 %v347
  %v528 = vpop.f32.mrf.mxu0
  %v529 = vadd.f32 0.0, %v528
  %v530 = vpop.f32.mrf.mxu0
  %531 = vmatprep.mubr.f32.mxu0 %v397
  %532 = vmatmul.mubr.f32.gmra.mxu0 %v349
  %v533 = vpop.f32.mrf.mxu0
  %v534 = vadd.f32 0.0, %v533
  %v535 = vpop.f32.mrf.mxu0
  %536 = vmatprep.mubr.f32.mxu0 %v400
  %537 = vmatmul.mubr.f32.gmra.mxu0 %v351
  %v538 = vpop.f32.mrf.mxu0
  %v539 = vadd.f32 0.0, %v538
  %v540 = vpop.f32.mrf.mxu0
  %541 = vmatprep.mubr.f32.mxu0 %v403
  %542 = vmatmul.mubr.f32.gmra.mxu0 %v353
  %v543 = vpop.f32.mrf.mxu0
  %v544 = vadd.f32 0.0, %v543
  %v545 = vpop.f32.mrf.mxu0
  %546 = vmatprep.mubr.f32.mxu0 %v406
  %547 = vmatmul.mubr.f32.gmra.mxu0 %v355
  %v548 = vpop.f32.mrf.mxu0
  %v549 = vadd.f32 0.0, %v548
  %v550 = vpop.f32.mrf.mxu0
  %551 = vmatprep.mubr.f32.mxu0 %v409
  %552 = vmatmul.mubr.f32.gmra.mxu0 %v357
  %v553 = vpop.f32.mrf.mxu0
  %v554 = vadd.f32 0.0, %v553
  %v555 = vpop.f32.mrf.mxu0
  %556 = vmatprep.mubr.f32.mxu0 %v412
  %557 = vmatmul.mubr.f32.gmra.mxu0 %v359
  %v558 = vpop.f32.mrf.mxu0
  %v559 = vadd.f32 0.0, %v558
  %v560 = vpop.f32.mrf.mxu0
  %561 = vmatprep.mubr.f32.mxu0 %v415
  %562 = vmatmul.mubr.f32.gmra.mxu0 %v361
  %v563 = vpop.f32.mrf.mxu0
  %v564 = vadd.f32 0.0, %v563
  %v565 = vpop.f32.mrf.mxu0
  %566 = vmatprep.mubr.f32.mxu0 %v418
  %567 = vmatmul.mubr.f32.gmra.mxu0 %v363
  %v568 = vpop.f32.mrf.mxu0
  %v569 = vadd.f32 0.0, %v568
  %v570 = vpop.f32.mrf.mxu0
  %571 = vmatprep.mubr.f32.mxu0 %v421
  %572 = vmatmul.mubr.f32.gmra.mxu0 %v365
  %v573 = vpop.f32.mrf.mxu0
  %v574 = vadd.f32 0.0, %v573
  %v575 = vpop.f32.mrf.mxu0
  %576 = vmatprep.mubr.f32.mxu0 %v424
  %577 = vmatmul.mubr.f32.gmra.mxu0 %v367
  %v578 = vpop.f32.mrf.mxu0
  %v579 = vadd.f32 0.0, %v578
  %v580 = vpop.f32.mrf.mxu0
  %581 = vmatprep.mubr.f32.mxu0 %v427
  %582 = vmatmul.mubr.f32.gmra.mxu0 %v369
  %v583 = vpop.f32.mrf.mxu0
  %v584 = vadd.f32 0.0, %v583
  %v585 = vpop.f32.mrf.mxu0
  %586 = vmatprep.mubr.f32.mxu0 %v430
  %587 = vmatmul.mubr.f32.gmra.mxu0 %v371
  %v588 = vpop.f32.mrf.mxu0
  %v589 = vadd.f32 0.0, %v588
  %v590 = vpop.f32.mrf.mxu0
  %591 = vmatprep.mubr.f32.mxu0 %v433
  %592 = vmatmul.mubr.f32.gmra.mxu0 %v373
  %v593 = vpop.f32.mrf.mxu0
  %v594 = vadd.f32 0.0, %v593
  %v595 = vpop.f32.mrf.mxu0
  %596 = vmatprep.mubr.f32.mxu0 %v436
  %597 = vmatmul.mubr.f32.gmra.mxu0 %v375
  %v598 = vpop.f32.mrf.mxu0
  %v599 = vadd.f32 0.0, %v598
  %v600 = vpop.f32.mrf.mxu0
  %601 = vmatprep.mubr.f32.mxu0 %v439
  %602 = vmatmul.mubr.f32.gmra.mxu0 %v377
  %v603 = vpop.f32.mrf.mxu0
  %v604 = vadd.f32 0.0, %v603
  %v605 = vpop.f32.mrf.mxu0
  %606 = vmatprep.mubr.f32.mxu0 %v442
  %607 = vmatmul.mubr.f32.gmra.mxu0 %v379
  %v608 = vpop.f32.mrf.mxu0
  %v609 = vadd.f32 0.0, %v608
  %v610 = vpop.f32.mrf.mxu0
  %611 = vmatprep.mubr.f32.mxu0 %v445
  %612 = vmatmul.mubr.f32.gmra.mxu0 %v381
  %v613 = vpop.f32.mrf.mxu0
  %v614 = vadd.f32 0.0, %v613
  %v615 = vpop.f32.mrf.mxu0
  %616 = vdwg.mxu0
  %v617 = vand.u32 2147483647, %v514
  %v618 = vand.u32 2147483647, %v519
  %v619 = vand.u32 2147483647, %v524
  %v620 = vand.u32 2147483647, %v529
  %v621 = vand.u32 2147483647, %v534
  %v622 = vand.u32 2147483647, %v539
  %v623 = vand.u32 2147483647, %v544
  %v624 = vand.u32 2147483647, %v549
  %v625 = vand.u32 2147483647, %v554
  %v626 = vand.u32 2147483647, %v559
  %v627 = vand.u32 2147483647, %v564
  %v628 = vand.u32 2147483647, %v569
  %v629 = vand.u32 2147483647, %v574
  %v630 = vand.u32 2147483647, %v579
  %v631 = vand.u32 2147483647, %v584
  %v632 = vand.u32 2147483647, %v589
  %v633 = vand.u32 2147483647, %v594
  %v634 = vand.u32 2147483647, %v599
  %v635 = vand.u32 2147483647, %v604
  %v636 = vand.u32 2147483647, %v609
  %v637 = vld [vmem:[%s4] sm:$0xff]
  %v638 = vld [vmem:[%s4 + $0x8] sm:$0xff]
  %v639 = vld [vmem:[%s4 + $0x10] sm:$0xff]
  %v640 = vld [vmem:[%s4 + $0x18] sm:$0xff]
  %v641 = vld [vmem:[%s4 + $0x20] sm:$0xff]
  %v642 = vld [vmem:[%s4 + $0x28] sm:$0xff]
  %v643 = vld [vmem:[%s4 + $0x30] sm:$0xff]
  %v644 = vld [vmem:[%s4 + $0x38] sm:$0xff]
  %v645 = vld [vmem:[%s4 + $0x40] sm:$0xff]
  %v646 = vld [vmem:[%s4 + $0x48] sm:$0xff]
  %v647 = vld [vmem:[%s4 + $0x50] sm:$0xff]
  %v648 = vld [vmem:[%s4 + $0x58] sm:$0xff]
  %v649 = vld [vmem:[%s4 + $0x60] sm:$0xff]
  %v650 = vld [vmem:[%s4 + $0x68] sm:$0xff]
  %v651 = vld [vmem:[%s4 + $0x70] sm:$0xff]
  %v652 = vld [vmem:[%s4 + $0x78] sm:$0xff]
  %v653 = vld [vmem:[%s1] sm:$0xf]
  %vm654 = vcmask 31744
  %v656 = vsel %vm654, %v637, 0
  %v659 = vsel %vm654, %v638, 0
  %v662 = vsel %vm654, %v639, 0
  %v665 = vsel %vm654, %v640, 0
  %v668 = vsel %vm654, %v641, 0
  %v671 = vsel %vm654, %v642, 0
  %v674 = vsel %vm654, %v643, 0
  %v677 = vsel %vm654, %v644, 0
  %v680 = vsel %vm654, %v645, 0
  %v683 = vsel %vm654, %v646, 0
  %v686 = vsel %vm654, %v647, 0
  %v689 = vsel %vm654, %v648, 0
  %v692 = vsel %vm654, %v649, 0
  %v695 = vsel %vm654, %v650, 0
  %v698 = vsel %vm654, %v651, 0
  %v701 = vsel %vm654, %v652, 0
  %vm703 = vcmask 1043456
  %v705 = vsel %vm703, %v653, 0
  %707 = vmatprep.subr.mxu0 0.0
  %708 = vmatpush1.msra.mxu0 0.0
  %709 = vmatprep.subr.mxu0 0.0
  %710 = vmatpush1.msra.mxu0 0.0
  %711 = vmatprep.subr.mxu0 0.0
  %712 = vmatpush1.msra.mxu0 0.0
  %713 = vmatprep.subr.mxu0 0.0
  %714 = vmatpush1.msra.mxu0 0.0
  %715 = vmatprep.subr.mxu0 0.0
  %716 = vmatpush1.msra.mxu0 0.0
  %717 = vmatprep.subr.mxu0 0.0
  %718 = vmatpush1.msra.mxu0 0.0
  %719 = vmatprep.subr.mxu0 0.0
  %720 = vmatpush1.msra.mxu0 0.0
  %721 = vmatprep.subr.mxu0 0.0
  %722 = vmatpush1.msra.mxu0 0.0
  %723 = vmatprep.subr.mxu0 0.0
  %724 = vmatpush1.msra.mxu0 0.0
  %725 = vmatprep.subr.mxu0 0.0
  %726 = vmatpush1.msra.mxu0 0.0
  %727 = vmatprep.subr.mxu0 0.0
  %728 = vmatpush1.msra.mxu0 0.0
  %729 = vmatprep.subr.mxu0 0.0
  %730 = vmatpush1.msra.mxu0 0.0
  %731 = vmatprep.subr.mxu0 0.0
  %732 = vmatpush1.msra.mxu0 0.0
  %733 = vmatprep.subr.mxu0 0.0
  %734 = vmatpush1.msra.mxu0 0.0
  %735 = vmatprep.subr.mxu0 0.0
  %736 = vmatpush1.msra.mxu0 0.0
  %737 = vmatprep.subr.mxu0 0.0
  %738 = vmatpush1.msra.mxu0 %v705
  %739 = vmatprep.subr.mxu0 0.0
  %740 = vmatpush2.msra.mxu0 0.0
  %741 = vmatprep.subr.mxu0 0.0
  %742 = vmatpush2.msra.mxu0 0.0
  %743 = vmatprep.subr.mxu0 0.0
  %744 = vmatpush2.msra.mxu0 0.0
  %745 = vmatprep.subr.mxu0 0.0
  %746 = vmatpush2.msra.mxu0 0.0
  %747 = vmatprep.subr.mxu0 0.0
  %748 = vmatpush2.msra.mxu0 0.0
  %749 = vmatprep.subr.mxu0 0.0
  %750 = vmatpush2.msra.mxu0 0.0
  %751 = vmatprep.subr.mxu0 0.0
  %752 = vmatpush2.msra.mxu0 0.0
  %753 = vmatprep.subr.mxu0 0.0
  %754 = vmatpush2.msra.mxu0 0.0
  %755 = vmatprep.subr.mxu0 0.0
  %756 = vmatpush2.msra.mxu0 0.0
  %757 = vmatprep.subr.mxu0 0.0
  %758 = vmatpush2.msra.mxu0 0.0
  %759 = vmatprep.subr.mxu0 0.0
  %760 = vmatpush2.msra.mxu0 0.0
  %761 = vmatprep.subr.mxu0 0.0
  %762 = vmatpush2.msra.mxu0 0.0
  %763 = vmatprep.subr.mxu0 0.0
  %764 = vmatpush2.msra.mxu0 0.0
  %765 = vmatprep.subr.mxu0 0.0
  %766 = vmatpush2.msra.mxu0 0.0
  %767 = vmatprep.subr.mxu0 0.0
  %768 = vmatpush2.msra.mxu0 0.0
  %769 = vmatprep.subr.mxu0 0.0
  %770 = vmatpush2.msra.mxu0 0.0
  %771 = vmatprep.mubr.f32.mxu0 0.0
  %772 = vmatmul.mubr.f32.gmra.mxu0 %v656
  %v773 = vpop.f32.mrf.mxu0
  %v774 = vadd.f32 0.0, %v773
  %v775 = vpop.f32.mrf.mxu0
  %776 = vmatprep.mubr.f32.mxu0 0.0
  %777 = vmatmul.mubr.f32.gmra.mxu0 %v659
  %v778 = vpop.f32.mrf.mxu0
  %v779 = vadd.f32 0.0, %v778
  %v780 = vpop.f32.mrf.mxu0
  %781 = vmatprep.mubr.f32.mxu0 0.0
  %782 = vmatmul.mubr.f32.gmra.mxu0 %v662
  %v783 = vpop.f32.mrf.mxu0
  %v784 = vadd.f32 0.0, %v783
  %v785 = vpop.f32.mrf.mxu0
  %786 = vmatprep.mubr.f32.mxu0 0.0
  %787 = vmatmul.mubr.f32.gmra.mxu0 %v665
  %v788 = vpop.f32.mrf.mxu0
  %v789 = vadd.f32 0.0, %v788
  %v790 = vpop.f32.mrf.mxu0
  %791 = vmatprep.mubr.f32.mxu0 0.0
  %792 = vmatmul.mubr.f32.gmra.mxu0 %v668
  %v793 = vpop.f32.mrf.mxu0
  %v794 = vadd.f32 0.0, %v793
  %v795 = vpop.f32.mrf.mxu0
  %796 = vmatprep.mubr.f32.mxu0 0.0
  %797 = vmatmul.mubr.f32.gmra.mxu0 %v671
  %v798 = vpop.f32.mrf.mxu0
  %v799 = vadd.f32 0.0, %v798
  %v800 = vpop.f32.mrf.mxu0
  %801 = vmatprep.mubr.f32.mxu0 0.0
  %802 = vmatmul.mubr.f32.gmra.mxu0 %v674
  %v803 = vpop.f32.mrf.mxu0
  %v804 = vadd.f32 0.0, %v803
  %v805 = vpop.f32.mrf.mxu0
  %806 = vmatprep.mubr.f32.mxu0 0.0
  %807 = vmatmul.mubr.f32.gmra.mxu0 %v677
  %v808 = vpop.f32.mrf.mxu0
  %v809 = vadd.f32 0.0, %v808
  %v810 = vpop.f32.mrf.mxu0
  %811 = vmatprep.mubr.f32.mxu0 0.0
  %812 = vmatmul.mubr.f32.gmra.mxu0 %v680
  %v813 = vpop.f32.mrf.mxu0
  %v814 = vadd.f32 0.0, %v813
  %v815 = vpop.f32.mrf.mxu0
  %816 = vmatprep.mubr.f32.mxu0 0.0
  %817 = vmatmul.mubr.f32.gmra.mxu0 %v683
  %v818 = vpop.f32.mrf.mxu0
  %v819 = vadd.f32 0.0, %v818
  %v820 = vpop.f32.mrf.mxu0
  %821 = vmatprep.mubr.f32.mxu0 0.0
  %822 = vmatmul.mubr.f32.gmra.mxu0 %v686
  %v823 = vpop.f32.mrf.mxu0
  %v824 = vadd.f32 0.0, %v823
  %v825 = vpop.f32.mrf.mxu0
  %826 = vmatprep.mubr.f32.mxu0 0.0
  %827 = vmatmul.mubr.f32.gmra.mxu0 %v689
  %v828 = vpop.f32.mrf.mxu0
  %v829 = vadd.f32 0.0, %v828
  %v830 = vpop.f32.mrf.mxu0
  %831 = vmatprep.mubr.f32.mxu0 0.0
  %832 = vmatmul.mubr.f32.gmra.mxu0 %v692
  %v833 = vpop.f32.mrf.mxu0
  %v834 = vadd.f32 0.0, %v833
  %v835 = vpop.f32.mrf.mxu0
  %836 = vmatprep.mubr.f32.mxu0 0.0
  %837 = vmatmul.mubr.f32.gmra.mxu0 %v695
  %v838 = vpop.f32.mrf.mxu0
  %v839 = vadd.f32 0.0, %v838
  %v840 = vpop.f32.mrf.mxu0
  %841 = vmatprep.mubr.f32.mxu0 0.0
  %842 = vmatmul.mubr.f32.gmra.mxu0 %v698
  %v843 = vpop.f32.mrf.mxu0
  %v844 = vadd.f32 0.0, %v843
  %v845 = vpop.f32.mrf.mxu0
  %846 = vmatprep.mubr.f32.mxu0 0.0
  %847 = vmatmul.mubr.f32.gmra.mxu0 %v701
  %v848 = vpop.f32.mrf.mxu0
  %v849 = vadd.f32 0.0, %v848
  %v850 = vpop.f32.mrf.mxu0
  %851 = vdwg.mxu0
  %v852 = vmul.f32 %v774, %v617
  %v853 = vmul.f32 %v779, %v618
  %v854 = vmul.f32 %v784, %v619
  %v855 = vmul.f32 %v789, %v620
  %v856 = vadd.f32 %v302, %v852
  %v857 = vadd.f32 %v307, %v853
  %v858 = vadd.f32 %v312, %v854
  %v859 = vadd.f32 %v317, %v855
  %v860 = vmul.f32 %v794, %v621
  %v861 = vmul.f32 %v799, %v622
  %v862 = vmul.f32 %v804, %v623
  %v863 = vmul.f32 %v809, %v624
  %v864 = vadd.f32 %v856, %v860
  %v865 = vadd.f32 %v857, %v861
  %v866 = vadd.f32 %v858, %v862
  %v867 = vadd.f32 %v859, %v863
  %v868 = vmul.f32 %v814, %v625
  %v869 = vmul.f32 %v819, %v626
  %v870 = vmul.f32 %v824, %v627
  %v871 = vmul.f32 %v829, %v628
  %v872 = vadd.f32 %v864, %v868
  %v873 = vadd.f32 %v865, %v869
  %v874 = vadd.f32 %v866, %v870
  %v875 = vadd.f32 %v867, %v871
  %v876 = vmul.f32 %v834, %v629
  %v877 = vmul.f32 %v839, %v630
  %v878 = vmul.f32 %v844, %v631
  %v879 = vmul.f32 %v849, %v632
  %v880 = vadd.f32 %v872, %v876
  %v881 = vadd.f32 %v873, %v877
  %v882 = vadd.f32 %v874, %v878
  %v883 = vadd.f32 %v875, %v879
  %vm884 = vcmp.gt.f32.partialorder %v880, 0.0
  %vm885 = vcmp.gt.f32.partialorder %v881, 0.0
  %vm886 = vcmp.gt.f32.partialorder %v882, 0.0
  %vm887 = vcmp.gt.f32.partialorder %v883, 0.0
  %v888 = vmin.f32 %v880, 0.0
  %v889 = vmin.f32 %v881, 0.0
  %v890 = vmin.f32 %v882, 0.0
  %v891 = vmin.f32 %v883, 0.0
  %v892 = vmul.f32 %v888, 1.442695
  %v893 = vpow.pop %v892
  %v894 = vmul.f32 %v889, 1.442695
  %v895 = vpow.pop %v894
  %v896 = vmul.f32 %v890, 1.442695
  %v897 = vpow.pop %v896
  %v898 = vmul.f32 %v891, 1.442695
  %v899 = vpow.pop %v898
  %v900 = vsub.f32 %v893, 1.0
  %v901 = vsub.f32 %v895, 1.0
  %v902 = vsub.f32 %v897, 1.0
  %v903 = vsub.f32 %v899, 1.0
  %v904 = vsel %vm884, %v880, %v900
  %v905 = vsel %vm885, %v881, %v901
  %v906 = vsel %vm886, %v882, %v902
  %v907 = vsel %vm887, %v883, %v903
  %v908 = vmul.f32 %v904, %v633
  %v909 = vmul.f32 %v905, %v634
  %v910 = vmul.f32 %v906, %v635
  %v911 = vmul.f32 %v907, %v636
  %vm912 = vcmask 261120
  %v914 = vsel %vm912, 1.0, 0
  %916 = vmatprep.subr.mxu0 0.0
  %917 = vmatpush1.msra.mxu0 0.0
  %918 = vmatprep.subr.mxu0 0.0
  %919 = vmatpush1.msra.mxu0 0.0
  %920 = vmatprep.subr.mxu0 0.0
  %921 = vmatpush1.msra.mxu0 0.0
  %922 = vmatprep.subr.mxu0 0.0
  %923 = vmatpush1.msra.mxu0 0.0
  %924 = vmatprep.subr.mxu0 0.0
  %925 = vmatpush1.msra.mxu0 0.0
  %926 = vmatprep.subr.mxu0 0.0
  %927 = vmatpush1.msra.mxu0 0.0
  %928 = vmatprep.subr.mxu0 0.0
  %929 = vmatpush1.msra.mxu0 0.0
  %930 = vmatprep.subr.mxu0 0.0
  %931 = vmatpush1.msra.mxu0 0.0
  %932 = vmatprep.subr.mxu0 0.0
  %933 = vmatpush1.msra.mxu0 0.0
  %934 = vmatprep.subr.mxu0 0.0
  %935 = vmatpush1.msra.mxu0 0.0
  %936 = vmatprep.subr.mxu0 0.0
  %937 = vmatpush1.msra.mxu0 0.0
  %938 = vmatprep.subr.mxu0 0.0
  %939 = vmatpush1.msra.mxu0 0.0
  %940 = vmatprep.subr.mxu0 0.0
  %941 = vmatpush1.msra.mxu0 %v911
  %942 = vmatprep.subr.mxu0 0.0
  %943 = vmatpush1.msra.mxu0 %v910
  %944 = vmatprep.subr.mxu0 0.0
  %945 = vmatpush1.msra.mxu0 %v909
  %946 = vmatprep.subr.mxu0 0.0
  %947 = vmatpush1.msra.mxu0 %v908
  %948 = vmatprep.subr.mxu0 0.0
  %949 = vmatpush2.msra.mxu0 0.0
  %950 = vmatprep.subr.mxu0 0.0
  %951 = vmatpush2.msra.mxu0 0.0
  %952 = vmatprep.subr.mxu0 0.0
  %953 = vmatpush2.msra.mxu0 0.0
  %954 = vmatprep.subr.mxu0 0.0
  %955 = vmatpush2.msra.mxu0 0.0
  %956 = vmatprep.subr.mxu0 0.0
  %957 = vmatpush2.msra.mxu0 0.0
  %958 = vmatprep.subr.mxu0 0.0
  %959 = vmatpush2.msra.mxu0 0.0
  %960 = vmatprep.subr.mxu0 0.0
  %961 = vmatpush2.msra.mxu0 0.0
  %962 = vmatprep.subr.mxu0 0.0
  %963 = vmatpush2.msra.mxu0 0.0
  %964 = vmatprep.subr.mxu0 0.0
  %965 = vmatpush2.msra.mxu0 0.0
  %966 = vmatprep.subr.mxu0 0.0
  %967 = vmatpush2.msra.mxu0 0.0
  %968 = vmatprep.subr.mxu0 0.0
  %969 = vmatpush2.msra.mxu0 0.0
  %970 = vmatprep.subr.mxu0 0.0
  %971 = vmatpush2.msra.mxu0 0.0
  %972 = vmatprep.subr.mxu0 0.0
  %973 = vmatpush2.msra.mxu0 0.0
  %974 = vmatprep.subr.mxu0 0.0
  %975 = vmatpush2.msra.mxu0 0.0
  %976 = vmatprep.subr.mxu0 0.0
  %977 = vmatpush2.msra.mxu0 0.0
  %978 = vmatprep.subr.mxu0 0.0
  %979 = vmatpush2.msra.mxu0 0.0
  %980 = vmatprep.mubr.f32.mxu0 0.0
  %981 = vmatmul.mubr.f32.gmra.mxu0 %v914
  %v982 = vpop.f32.mrf.mxu0
  %v983 = vadd.f32 %v614, %v982
  %v984 = vpop.f32.mrf.mxu0
  %985 = vdwg.mxu0
  %986 = vst [vmem:[%s5] sm:$0x1] %v983
  // Predicated region
  $region22: #{qmix_forward.1} parent=0 // pred_check
    _
  $region23: #{qmix_forward.1} parent=0 // pred_check_branch
    %988 = sbr.rel (0) target = $region25
  $region24: #{qmix_forward.1} parent=0 // pred_region
    _
  $region25: #{qmix_forward.1} parent=0 // pred_fallthru
    _
  // Predicated region
  $region26: #{qmix_forward.1} parent=0 // pred_check
    _
  $region27: #{qmix_forward.1} parent=0 // pred_check_branch
    %990 = sbr.rel (0) target = $region29
  $region28: #{qmix_forward.1} parent=0 // pred_region
    _
  $region29: #{qmix_forward.1} parent=0 // pred_fallthru
    _

</llo_original>
